<compile_context>
chip_gen: v5e
topology: v5e:2x2
jax: 0.10.0
libtpu: 0.0.40
codegen_flags: <defaults>
</compile_context>

<pallas_src>
import functools

import jax
import jax.numpy as jnp
from jax.experimental import pallas as pl
from jax.experimental.pallas import tpu as pltpu

_LANES = 128


def _round_up(n, m):
    return ((n + m - 1) // m) * m


def fcv_kernel(xT_ref, w0_ref, b0_ref, w1_ref, b1_ref, w2_ref, b2_ref, o_ref,
               *, matmul_dtype):
    # Layer 1: (H0, F) @ (F, TB) -> (H0, TB), bias + ReLU.  Operands cast to
    # matmul_dtype (bf16 by default), accumulation stays f32.
    h0 = jnp.dot(w0_ref[...].astype(matmul_dtype),
                 xT_ref[...].astype(matmul_dtype),
                 preferred_element_type=jnp.float32)
    h0 = jnp.maximum(h0 + b0_ref[...], 0.0)

    # Layer 2: (H1, H0) @ (H0, TB) -> (H1, TB), bias + ReLU.
    # TODO(synk): training-mode Dropout(p=0.1) masking not implemented; eval
    # (identity) semantics are used, as in module.eval().
    h1 = jnp.dot(w1_ref[...].astype(matmul_dtype),
                 h0.astype(matmul_dtype),
                 preferred_element_type=jnp.float32)
    h1 = jnp.maximum(h1 + b1_ref[...], 0.0)

    # Output layer on the MXU: (1, H1) @ (H1, TB) -> (1, TB); scalar bias from
    # SMEM.  (MXU has slack here; the VALU carries the bias+ReLU stream.)
    out = jnp.dot(w2_ref[...].astype(matmul_dtype),
                  h1.astype(matmul_dtype),
                  preferred_element_type=jnp.float32)
    o_ref[...] = out + b2_ref[0, 0]


def fcv_forward(x, params, tile_b=32768, matmul_dtype=jnp.bfloat16):
    """x: (B, F) float32. Returns (B,) float32 (matches .squeeze())."""
    w0, b0, w1, b1, w2, b2 = params  # (H0,F),(H0,1),(H1,H0),(H1,1),(1,H1),(1,1)
    B, F = x.shape
    H0 = w0.shape[0]
    H1 = w1.shape[0]

    # Pad the batch only to the next multiple of 128 lanes (never to tile_b).
    bp = _round_up(B, _LANES)

    # Batch tile: multiple of 128 lanes, capped at tile_b.  Once B spans more
    # than one lane-tile, force >= 2 grid steps so v7x's two TensorCores both
    # get work under dimension_semantics=("parallel",).
    if bp > _LANES:
        tb = min(tile_b, _round_up(pl.cdiv(bp, 2), _LANES))
    else:
        tb = _LANES
    grid_b = pl.cdiv(bp, tb)  # last block may be partial (multiple of 128 lanes)

    # Batch-on-lanes layout: transpose (+ minimal pad).  allow_input_fusion on
    # this operand lets XLA fuse the transpose/pad into the pallas_call rather
    # than materializing an extra HBM pass over x.
    xT = x.T
    if bp != B:
        xT = jnp.pad(xT, ((0, 0), (0, bp - B)))

    def resident(shape):
        # Constant block index -> DMA'd into VMEM once, resident for all tiles.
        return pl.BlockSpec(shape, lambda i: (0, 0))

    flops = 2 * B * (F * H0 + H0 * H1 + H1)
    bytes_accessed = 4 * (B * F + B) + 4 * (F * H0 + H0 + H0 * H1 + H1 + H1 + 1)

    kernel = functools.partial(fcv_kernel, matmul_dtype=matmul_dtype)

    out = pl.pallas_call(
        kernel,
        out_shape=jax.ShapeDtypeStruct((1, bp), jnp.float32),
        grid_spec=pltpu.PrefetchScalarGridSpec(
            num_scalar_prefetch=0,
            grid=(grid_b,),
            in_specs=[
                pl.BlockSpec((F, tb), lambda i: (0, i)),   # streamed x tiles
                resident((H0, F)),
                resident((H0, 1)),
                resident((H1, H0)),
                resident((H1, 1)),
                resident((1, H1)),
                pl.BlockSpec(memory_space=pltpu.MemorySpace.SMEM),  # b2 scalar
            ],
            out_specs=pl.BlockSpec((1, tb), lambda i: (0, i)),
        ),
        compiler_params=pltpu.CompilerParams(
            dimension_semantics=("parallel",),
            vmem_limit_bytes=32 * 1024 * 1024,
            allow_input_fusion=[True, False, False, False, False, False, False],
        ),
        cost_estimate=pl.CostEstimate(
            flops=flops, transcendentals=0, bytes_accessed=bytes_accessed),
    )(xT, w0, b0, w1, b1, w2, b2)

    # Padded columns [B:bp] contain junk (bias+ReLU of padding); always slice.
    return out[0, :B]


def init_params(key, input_dim, hidden_dims=(32, 32)):
    """PyTorch nn.Linear-style init: U(-1/sqrt(fan_in), 1/sqrt(fan_in)).

    All weights stored as (out, in), biases as (out, 1) -- matmul-ready for
    the transposed (batch-on-lanes) kernel layout.  The output layer is thus
    (1, hidden_dims[-1]) / (1, 1).
    """
    dims = (input_dim,) + tuple(hidden_dims) + (1,)
    params = []
    for i in range(len(dims) - 1):
        fan_in, fan_out = dims[i], dims[i + 1]
        key, kw, kb = jax.random.split(key, 3)
        bound = 1.0 / (fan_in ** 0.5)
        w = jax.random.uniform(kw, (fan_out, fan_in), jnp.float32, -bound, bound)
        b = jax.random.uniform(kb, (fan_out, 1), jnp.float32, -bound, bound)
        params += [w, b]
    return params


def fcv_reference(x, params, matmul_dtype=jnp.float32):
    """Pure-JAX reference of the same forward pass (eval-mode dropout).

    With matmul_dtype=jnp.bfloat16 it mirrors the kernel's bf16-operand /
    f32-accumulation matmuls, so it can be compared tightly against the
    default kernel mode.
    """
    w0, b0, w1, b1, w2, b2 = params
    c = lambda a: a.astype(matmul_dtype)
    h0 = jnp.maximum(
        jnp.dot(c(x), c(w0.T), preferred_element_type=jnp.float32) + b0.T, 0.0)
    h1 = jnp.maximum(
        jnp.dot(c(h0), c(w1.T), preferred_element_type=jnp.float32) + b1.T, 0.0)
    out = jnp.dot(c(h1), c(w2.T), preferred_element_type=jnp.float32) + b2
    return jnp.squeeze(out, axis=-1)


if __name__ == "__main__":
    key = jax.random.PRNGKey(0)
    k_x, k_x2, k_p = jax.random.split(key, 3)

    input_dim = 4            # FCV(input_dim=(4,), hidden_dims=(32, 32))
    hidden_dims = (32, 32)
    params = init_params(k_p, input_dim, hidden_dims)

    # Small batch (typical PPO critic call), single tile.
    x = jax.random.normal(k_x, (8, input_dim), dtype=jnp.float32)
    y = jax.block_until_ready(fcv_forward(x, params))
    assert y.shape == (8,)
    # Tight check vs a precision-matched (bf16-operand) reference ...
    assert jnp.allclose(y, fcv_reference(x, params, matmul_dtype=jnp.bfloat16),
                        atol=1e-2, rtol=1e-2)
    # ... and a loose sanity check vs the full-f32 reference.
    assert jnp.allclose(y, fcv_reference(x, params), atol=1e-1, rtol=1e-1)

    # Multi-tile grid with a 128-lane padded tail and a partial last block
    # (B=300, tb=256 -> grid=2), exercising the pipelined path.
    x2 = jax.random.normal(k_x2, (300, input_dim), dtype=jnp.float32)
    y2 = jax.block_until_ready(fcv_forward(x2, params, tile_b=256))
    assert y2.shape == (300,)
    assert jnp.allclose(y2, fcv_reference(x2, params, matmul_dtype=jnp.bfloat16),
                        atol=1e-2, rtol=1e-2)
    assert jnp.allclose(y2, fcv_reference(x2, params), atol=1e-1, rtol=1e-1)

    print("KERNEL_OK")
</pallas_src>

<mosaic_0001>
module attributes {stable_mosaic.version = 11 : i64} {
  func.func @fcv_kernel(%arg0: i32, %arg1: memref<4x128xf32, #tpu.memory_space<vmem>>, %arg2: memref<32x4xf32, #tpu.memory_space<vmem>>, %arg3: memref<32x1xf32, #tpu.memory_space<vmem>>, %arg4: memref<32x32xf32, #tpu.memory_space<vmem>>, %arg5: memref<32x1xf32, #tpu.memory_space<vmem>>, %arg6: memref<1x32xf32, #tpu.memory_space<vmem>>, %arg7: memref<1x1xf32, #tpu.memory_space<smem>>, %arg8: memref<1x128xf32, #tpu.memory_space<vmem>>) attributes {dimension_semantics = [#tpu.dimension_semantics<parallel>], iteration_bounds = array<i64: 1>, scalar_prefetch = 0 : i64, scratch_operands = 0 : i64, tpu.core_type = #tpu.core_type<tc>, window_params = [{transform_indices = @transform_0, window_bounds = array<i64: 4, 128>}, {pipeline_mode = #tpu.pipeline_mode<synchronous>, transform_indices = @transform_1, window_bounds = array<i64: 32, 4>}, {pipeline_mode = #tpu.pipeline_mode<synchronous>, transform_indices = @transform_2, window_bounds = array<i64: 32, 1>}, {pipeline_mode = #tpu.pipeline_mode<synchronous>, transform_indices = @transform_3, window_bounds = array<i64: 32, 32>}, {pipeline_mode = #tpu.pipeline_mode<synchronous>, transform_indices = @transform_4, window_bounds = array<i64: 32, 1>}, {pipeline_mode = #tpu.pipeline_mode<synchronous>, transform_indices = @transform_5, window_bounds = array<i64: 1, 32>}, {transform_indices = @transform_6, window_bounds = array<i64: 1, 1>}, {transform_indices = @transform_7, window_bounds = array<i64: 1, 128>}]} {
    %c0 = arith.constant 0 : index
    %c0_0 = arith.constant 0 : index
    %0 = vector.load %arg2[%c0, %c0_0] : memref<32x4xf32, #tpu.memory_space<vmem>>, vector<32x4xf32>
    %1 = arith.truncf %0 : vector<32x4xf32> to vector<32x4xbf16>
    %c0_1 = arith.constant 0 : index
    %c0_2 = arith.constant 0 : index
    %2 = vector.load %arg1[%c0_1, %c0_2] : memref<4x128xf32, #tpu.memory_space<vmem>>, vector<4x128xf32>
    %3 = arith.truncf %2 : vector<4x128xf32> to vector<4x128xbf16>
    %cst = arith.constant dense<0.000000e+00> : vector<32x128xf32>
    %4 = tpu.matmul %1, %3, %cst {dimension_numbers = #tpu.dot_dimension_numbers<[1], [0], [0], [1], [0, 0, 1, 1], [], []>} : vector<32x4xbf16>, vector<4x128xbf16>, vector<32x128xf32> -> vector<32x128xf32>
    %c0_3 = arith.constant 0 : index
    %c0_4 = arith.constant 0 : index
    %5 = vector.load %arg3[%c0_3, %c0_4] : memref<32x1xf32, #tpu.memory_space<vmem>>, vector<32x1xf32>
    %6 = vector.broadcast %5 : vector<32x1xf32> to vector<32x128xf32>
    %7 = arith.addf %4, %6 : vector<32x128xf32>
    %cst_5 = arith.constant 0.000000e+00 : f32
    %8 = vector.broadcast %cst_5 : f32 to vector<32x128xf32>
    %9 = arith.maximumf %7, %8 : vector<32x128xf32>
    %c0_6 = arith.constant 0 : index
    %c0_7 = arith.constant 0 : index
    %10 = vector.load %arg4[%c0_6, %c0_7] : memref<32x32xf32, #tpu.memory_space<vmem>>, vector<32x32xf32>
    %11 = arith.truncf %10 : vector<32x32xf32> to vector<32x32xbf16>
    %12 = arith.truncf %9 : vector<32x128xf32> to vector<32x128xbf16>
    %cst_8 = arith.constant dense<0.000000e+00> : vector<32x128xf32>
    %13 = tpu.matmul %11, %12, %cst_8 {dimension_numbers = #tpu.dot_dimension_numbers<[1], [0], [0], [1], [0, 0, 1, 1], [], []>} : vector<32x32xbf16>, vector<32x128xbf16>, vector<32x128xf32> -> vector<32x128xf32>
    %c0_9 = arith.constant 0 : index
    %c0_10 = arith.constant 0 : index
    %14 = vector.load %arg5[%c0_9, %c0_10] : memref<32x1xf32, #tpu.memory_space<vmem>>, vector<32x1xf32>
    %15 = vector.broadcast %14 : vector<32x1xf32> to vector<32x128xf32>
    %16 = arith.addf %13, %15 : vector<32x128xf32>
    %cst_11 = arith.constant 0.000000e+00 : f32
    %17 = vector.broadcast %cst_11 : f32 to vector<32x128xf32>
    %18 = arith.maximumf %16, %17 : vector<32x128xf32>
    %c0_12 = arith.constant 0 : index
    %c0_13 = arith.constant 0 : index
    %19 = vector.load %arg6[%c0_12, %c0_13] : memref<1x32xf32, #tpu.memory_space<vmem>>, vector<1x32xf32>
    %20 = arith.truncf %19 : vector<1x32xf32> to vector<1x32xbf16>
    %21 = arith.truncf %18 : vector<32x128xf32> to vector<32x128xbf16>
    %cst_14 = arith.constant dense<0.000000e+00> : vector<1x128xf32>
    %22 = tpu.matmul %20, %21, %cst_14 {dimension_numbers = #tpu.dot_dimension_numbers<[1], [0], [0], [1], [0, 0, 1, 1], [], []>} : vector<1x32xbf16>, vector<32x128xbf16>, vector<1x128xf32> -> vector<1x128xf32>
    %c0_15 = arith.constant 0 : index
    %c0_16 = arith.constant 0 : index
    %23 = memref.load %arg7[%c0_15, %c0_16] : memref<1x1xf32, #tpu.memory_space<smem>>
    %24 = vector.broadcast %23 : f32 to vector<1x128xf32>
    %25 = arith.addf %22, %24 : vector<1x128xf32>
    %c0_17 = arith.constant 0 : index
    %c0_18 = arith.constant 0 : index
    %26 = vector.load %arg8[%c0_17, %c0_18] : memref<1x128xf32, #tpu.memory_space<vmem>>, vector<1x128xf32>
    tpu.vector_store %arg8[%c0_17, %c0_18], %25 {strides = array<i32>} : memref<1x128xf32, #tpu.memory_space<vmem>>, vector<1x128xf32>,
    return
  }
  func.func @transform_0(%arg0: i32) -> (i32, i32) {
    %c0_i32 = arith.constant 0 : i32
    %c0_i32_0 = arith.constant 0 : i32
    return %c0_i32, %arg0 : i32, i32
  }
  func.func @transform_1(%arg0: i32) -> (i32, i32) {
    %c0_i32 = arith.constant 0 : i32
    %c0_i32_0 = arith.constant 0 : i32
    %c0_i32_1 = arith.constant 0 : i32
    return %c0_i32, %c0_i32_0 : i32, i32
  }
  func.func @transform_2(%arg0: i32) -> (i32, i32) {
    %c0_i32 = arith.constant 0 : i32
    %c0_i32_0 = arith.constant 0 : i32
    %c0_i32_1 = arith.constant 0 : i32
    return %c0_i32, %c0_i32_0 : i32, i32
  }
  func.func @transform_3(%arg0: i32) -> (i32, i32) {
    %c0_i32 = arith.constant 0 : i32
    %c0_i32_0 = arith.constant 0 : i32
    %c0_i32_1 = arith.constant 0 : i32
    return %c0_i32, %c0_i32_0 : i32, i32
  }
  func.func @transform_4(%arg0: i32) -> (i32, i32) {
    %c0_i32 = arith.constant 0 : i32
    %c0_i32_0 = arith.constant 0 : i32
    %c0_i32_1 = arith.constant 0 : i32
    return %c0_i32, %c0_i32_0 : i32, i32
  }
  func.func @transform_5(%arg0: i32) -> (i32, i32) {
    %c0_i32 = arith.constant 0 : i32
    %c0_i32_0 = arith.constant 0 : i32
    %c0_i32_1 = arith.constant 0 : i32
    return %c0_i32, %c0_i32_0 : i32, i32
  }
  func.func @transform_6(%arg0: i32) -> (i32, i32) {
    %c0_i32 = arith.constant 0 : i32
    %c0_i32_0 = arith.constant 0 : i32
    %c0_i32_1 = arith.constant 0 : i32
    return %c0_i32, %c0_i32_0 : i32, i32
  }
  func.func @transform_7(%arg0: i32) -> (i32, i32) {
    %c0_i32 = arith.constant 0 : i32
    %c0_i32_0 = arith.constant 0 : i32
    return %c0_i32, %arg0 : i32, i32
  }
}

</mosaic_0001>

<llo_original>
// kernel: tpu_custom_call.1
$region0: #{tpu_custom_call.1}
  #allocation0 [shape = 'u32[]', space=smem, size = 0x4, offset = 0x4, fixed_abs, tag = 'smem constant byte address 0x4 - core index']
  #allocation1 [shape = 'u32[72,128]{1,0:T(1,128)}', space=vmem, size = 0x9000, scoped, tag = 'internal scratch']
  #allocation2 [shape = 'f32[1,1]{1,0:T(1,128)S(6)}', space=smem, size = 0x200, scoped, tag = 'scoped memory for tpu_custom_call.1']
  %s0 = inlined_call_operand.vmem [shape: f32[4,128], index: 0, kind: input, shape index: {}]
  %s1 = inlined_call_operand.vmem [shape: f32[32,4], index: 1, kind: input, shape index: {}]
  %s2 = inlined_call_operand.vmem [shape: f32[32,1], index: 2, kind: input, shape index: {}]
  %s3 = inlined_call_operand.vmem [shape: f32[32,32], index: 3, kind: input, shape index: {}]
  %s4 = inlined_call_operand.vmem [shape: f32[32,1], index: 4, kind: input, shape index: {}]
  %s5 = inlined_call_operand.vmem [shape: f32[1,32], index: 5, kind: input, shape index: {}]
  %s6 = inlined_call_operand.<no memory space> [shape: f32[1,1], index: 6, kind: input, shape index: {}]
  %s7 = inlined_call_operand.hbm [shape: f32[1,128], index: 7, kind: output, shape index: {}]
  %s8 = sld [smem:[#allocation0]]
  $region38: #{tpu_custom_call.1} parent=0
    _
  %s10 = ssub.s32 1, %s8
  %s11 = scalar_select 0, %s10, %s8
  %12 = sst [smem:[#allocation2]] %s6
  $region1: #{tpu_custom_call.1} parent=0
    #allocation3 [shape = 'u8[512]{0}', space=vmem, size = 0x400, scoped, tag = 'output window, operand 0, single buffered']
    #allocation4 [shape = 's32[1]{0}', space=sflag, size = 0x4, scoped, tag = 'scoped memory for tpu_custom_call.1']
    %13 = vsyncpa [#allocation4], 0
    // Predicated region
    $region2: #{tpu_custom_call.1} parent=1 // pred_check
      _
    $region3: #{tpu_custom_call.1} parent=1 // pred_check_branch
      %15 = sbr.rel (0) target = $region5
    $region4: #{tpu_custom_call.1} parent=1 // pred_region
      _
    $region5: #{tpu_custom_call.1} parent=1 // pred_fallthru
      _
    // Predicated region
    $region6: #{tpu_custom_call.1} parent=1 // pred_check
      _
    $region7: #{tpu_custom_call.1} parent=1 // pred_check_branch
      %17 = sbr.rel (0) target = $region9
    $region8: #{tpu_custom_call.1} parent=1 // pred_region
      _
    $region9: #{tpu_custom_call.1} parent=1 // pred_fallthru
      _
    // Predicated region
    $region10: #{tpu_custom_call.1} parent=1 // pred_check
      _
    $region11: #{tpu_custom_call.1} parent=1 // pred_check_branch
      %19 = sbr.rel (0) target = $region13
    $region12: #{tpu_custom_call.1} parent=1 // pred_region
      _
    $region13: #{tpu_custom_call.1} parent=1 // pred_fallthru
      _
    // Predicated region
    $region14: #{tpu_custom_call.1} parent=1 // pred_check
      _
    $region15: #{tpu_custom_call.1} parent=1 // pred_check_branch
      %21 = sbr.rel (0) target = $region17
    $region16: #{tpu_custom_call.1} parent=1 // pred_region
      _
    $region17: #{tpu_custom_call.1} parent=1 // pred_fallthru
      _
    // Predicated region
    $region18: #{tpu_custom_call.1} parent=1 // pred_check
      _
    $region19: #{tpu_custom_call.1} parent=1 // pred_check_branch
      %23 = sbr.rel (0) target = $region21
    $region20: #{tpu_custom_call.1} parent=1 // pred_region
      _
    $region21: #{tpu_custom_call.1} parent=1 // pred_fallthru
      _
    // Predicated region
    $region22: #{tpu_custom_call.1} parent=1 // pred_check
      _
    $region23: #{tpu_custom_call.1} parent=1 // pred_check_branch
      %25 = sbr.rel (0) target = $region25
    $region24: #{tpu_custom_call.1} parent=1 // pred_region
      _
    $region25: #{tpu_custom_call.1} parent=1 // pred_fallthru
      _
    // Predicated region
    $region26: #{tpu_custom_call.1} parent=1 // pred_check
      _
    $region27: #{tpu_custom_call.1} parent=1 // pred_check_branch
      %27 = sbr.rel (0) target = $region29
    $region28: #{tpu_custom_call.1} parent=1 // pred_region
      _
    $region29: #{tpu_custom_call.1} parent=1 // pred_fallthru
      _
    %v29 = vld [vmem:[%s1] sm:$0xff]
    %v30 = vld [vmem:[%s1 + $0x8] sm:$0xff]
    %v31 = vld [vmem:[%s1 + $0x10] sm:$0xff]
    %v32 = vld [vmem:[%s1 + $0x18] sm:$0xff]
    %v33 = vpack.c.bf16 %v30, %v29
    %v34 = vpack.c.bf16 %v32, %v31
    %v35 = vld [vmem:[%s0] sm:$0xf]
    %v36 = vpack.c.bf16 %v35, %v35
    %v37 = vld [vmem:[%s2] sm:$0xff]
    %v38 = vld [vmem:[%s2 + $0x8] sm:$0xff]
    %v39 = vld [vmem:[%s2 + $0x10] sm:$0xff]
    %v40 = vld [vmem:[%s2 + $0x18] sm:$0xff]
    %42 = vset.pattern.permute.xlu0 0
    %43 = vperm.xlu0 %42, %v37
    %v44 = vpop.permute.xlu0 %43
    %47 = vset.pattern.permute.xlu0 0
    %48 = vperm.xlu0 %47, %v38
    %v49 = vpop.permute.xlu0 %48
    %52 = vset.pattern.permute.xlu0 0
    %53 = vperm.xlu0 %52, %v39
    %v54 = vpop.permute.xlu0 %53
    %57 = vset.pattern.permute.xlu0 0
    %58 = vperm.xlu0 %57, %v40
    %v59 = vpop.permute.xlu0 %58
    %vm61 = vcmask 31744
    %v63 = vsel %vm61, %v33, 0
    %v66 = vsel %vm61, %v34, 0
    %vm68 = vcmask 1041408
    %v70 = vsel %vm68, %v36, 0
    %72 = vmatpush.bf16.msra.mxu0 0
    %73 = vmatpush.bf16.msra.mxu0 0
    %74 = vmatpush.bf16.msra.mxu0 0
    %75 = vmatpush.bf16.msra.mxu0 0
    %76 = vmatpush.bf16.msra.mxu0 0
    %77 = vmatpush.bf16.msra.mxu0 0
    %78 = vmatpush.bf16.msra.mxu0 0
    %79 = vmatpush.bf16.msra.mxu0 %v70
    %80 = vmatmul.bf16.gmra.mxu0 %v63
    %v81 = vpop.f32.mrf.mxu0
    %v82 = vadd.f32 %v44, %v81
    %v83 = vpop.f32.mrf.mxu0
    %v84 = vadd.f32 %v49, %v83
    %85 = vmatmul.bf16.gmra.mxu0 %v66
    %v86 = vpop.f32.mrf.mxu0
    %v87 = vadd.f32 %v54, %v86
    %v88 = vpop.f32.mrf.mxu0
    %v89 = vadd.f32 %v59, %v88
    %90 = vdwg.mxu0
    %v91 = vmax.f32 %v82, 0.0
    %v92 = vmax.f32 %v84, 0.0
    %v93 = vmax.f32 %v87, 0.0
    %v94 = vmax.f32 %v89, 0.0
    %v95 = vld [vmem:[%s3] sm:$0xff]
    %v96 = vld [vmem:[%s3 + $0x8] sm:$0xff]
    %v97 = vld [vmem:[%s3 + $0x10] sm:$0xff]
    %v98 = vld [vmem:[%s3 + $0x18] sm:$0xff]
    %v99 = vpack.c.bf16 %v96, %v95
    %v100 = vpack.c.bf16 %v98, %v97
    %v101 = vpack.c.bf16 %v92, %v91
    %v102 = vpack.c.bf16 %v94, %v93
    %v103 = vld [vmem:[%s4] sm:$0xff]
    %v104 = vld [vmem:[%s4 + $0x8] sm:$0xff]
    %v105 = vld [vmem:[%s4 + $0x10] sm:$0xff]
    %v106 = vld [vmem:[%s4 + $0x18] sm:$0xff]
    %108 = vset.pattern.permute.xlu0 0
    %109 = vperm.xlu0 %108, %v103
    %v110 = vpop.permute.xlu0 %109
    %113 = vset.pattern.permute.xlu0 0
    %114 = vperm.xlu0 %113, %v104
    %v115 = vpop.permute.xlu0 %114
    %118 = vset.pattern.permute.xlu0 0
    %119 = vperm.xlu0 %118, %v105
    %v120 = vpop.permute.xlu0 %119
    %123 = vset.pattern.permute.xlu0 0
    %124 = vperm.xlu0 %123, %v106
    %v125 = vpop.permute.xlu0 %124
    %vm127 = vcmask 261120
    %v129 = vsel %vm127, %v99, 0
    %v132 = vsel %vm127, %v100, 0
    %134 = vmatpush.bf16.msra.mxu0 0
    %135 = vmatpush.bf16.msra.mxu0 0
    %136 = vmatpush.bf16.msra.mxu0 0
    %137 = vmatpush.bf16.msra.mxu0 0
    %138 = vmatpush.bf16.msra.mxu0 0
    %139 = vmatpush.bf16.msra.mxu0 0
    %140 = vmatpush.bf16.msra.mxu0 %v102
    %141 = vmatpush.bf16.msra.mxu0 %v101
    %142 = vmatmul.bf16.gmra.mxu0 %v129
    %v143 = vpop.f32.mrf.mxu0
    %v144 = vadd.f32 %v110, %v143
    %v145 = vpop.f32.mrf.mxu0
    %v146 = vadd.f32 %v115, %v145
    %147 = vmatmul.bf16.gmra.mxu0 %v132
    %v148 = vpop.f32.mrf.mxu0
    %v149 = vadd.f32 %v120, %v148
    %v150 = vpop.f32.mrf.mxu0
    %v151 = vadd.f32 %v125, %v150
    %152 = vdwg.mxu0
    %v153 = vmax.f32 %v144, 0.0
    %v154 = vmax.f32 %v146, 0.0
    %v155 = vmax.f32 %v149, 0.0
    %v156 = vmax.f32 %v151, 0.0
    %v157 = vld [vmem:[%s5] sm:$0x1]
    %v158 = vpack.c.bf16 %v157, %v157
    %v159 = vpack.c.bf16 %v154, %v153
    %v160 = vpack.c.bf16 %v156, %v155
    %s161 = sld [smem:[#allocation2]]
    %v162 = vstv %s161
    %v164 = vsel %vm127, %v158, 0
    %166 = vmatpush.bf16.msra.mxu0 0
    %167 = vmatpush.bf16.msra.mxu0 0
    %168 = vmatpush.bf16.msra.mxu0 0
    %169 = vmatpush.bf16.msra.mxu0 0
    %170 = vmatpush.bf16.msra.mxu0 0
    %171 = vmatpush.bf16.msra.mxu0 0
    %172 = vmatpush.bf16.msra.mxu0 %v160
    %173 = vmatpush.bf16.msra.mxu0 %v159
    %174 = vmatmul.bf16.gmra.mxu0 %v164
    %v175 = vpop.f32.mrf.mxu0
    %v176 = vadd.f32 %v162, %v175
    %v177 = vpop.f32.mrf.mxu0
    %178 = vdwg.mxu0
    %179 = vst [vmem:[#allocation3] sm:$0x1] %v176
    // Predicated region
    $region30: #{tpu_custom_call.1} parent=1 // pred_check
      _
    $region31: #{tpu_custom_call.1} parent=1 // pred_check_branch
      %181 = sbr.rel (0) target = $region33
    $region32: #{tpu_custom_call.1} parent=1 // pred_region
      %183 = vsyncadd [#allocation4], 0
      %s185 = sshll.u32 [#allocation3], 4
      %s186 = int_to_ptr.vmem [resolvable:$true] %s185
      %s187 = sshll.u32 %s7, 4
      %s188 = int_to_ptr.hbm [resolvable:$true] %s187
      %190 = dma.vmem_to_hbm [thread:$0]  %s186, 16, %s188, [#allocation4]
    $region33: #{tpu_custom_call.1} parent=1 // pred_fallthru
      _
    // Predicated region
    $region34: #{tpu_custom_call.1} parent=1 // pred_check
      _
    $region35: #{tpu_custom_call.1} parent=1 // pred_check_branch
      %192 = sbr.rel (0) target = $region37
    $region36: #{tpu_custom_call.1} parent=1 // pred_region
      %194 = dma.done [#allocation4], 16
    $region37: #{tpu_custom_call.1} parent=1 // pred_fallthru
      _
    %195 = vsyncpa [#allocation4], 1

</llo_original>
